<compile_context>
chip_gen: v7x
topology: tpu7x:2x2x1
jax: 0.10.0
libtpu: 0.0.40
codegen_flags: <defaults>
</compile_context>

<pallas_src>
import jax
import jax.numpy as jnp
from jax.experimental import pallas as pl
from jax.experimental.pallas import tpu as pltpu


def _round_up(x: int, m: int) -> int:
    return ((x + m - 1) // m) * m


def _cdiv(a: int, b: int) -> int:
    return -(-a // b)


def policy_net_kernel(x_ref, w1_ref, b1_ref, w2_ref, b2_ref, w3_ref, b3_ref, o_ref):
    """Fused 3-layer MLP on one (tb, env_dim) batch tile.

    Layer 1 runs as f32 VPU rank-1 updates when env_dim is tiny; layers 2/3 run
    as bf16 MXU dots with f32 accumulation.  Bias add / ReLU stay in f32.
    """
    env_dim = x_ref.shape[1]
    x = x_ref[...]                                   # (tb, env_dim) f32

    # ---- Layer 1: x @ w1 + b1, ReLU ----
    h1 = b1_ref[...]                                 # (1, 128); broadcasts below
    if env_dim <= 16:
        # K is tiny: env_dim broadcast-FMAs on the VPU instead of a mostly-zero
        # MXU pass (one third of the kernel's MXU work in the original version).
        for k in range(env_dim):
            h1 = h1 + x[:, k:k + 1] * w1_ref[pl.ds(k, 1), :]
    else:
        h1 = h1 + jnp.dot(x, w1_ref[...], preferred_element_type=jnp.float32)
    h1 = jnp.maximum(h1, 0.0)                        # (tb, 128) f32

    # ---- Layer 2: h1 @ w2 + b2, ReLU (bf16 MXU, f32 acc) ----
    h2 = jnp.dot(h1.astype(w2_ref.dtype), w2_ref[...],
                 preferred_element_type=jnp.float32) + b2_ref[...]
    h2 = jnp.maximum(h2, 0.0)                        # (tb, 64) f32

    # ---- Layer 3: h2 @ w3 + b3, written at native action_num width ----
    out = jnp.dot(h2.astype(w3_ref.dtype), w3_ref[...],
                  preferred_element_type=jnp.float32) + b3_ref[...]
    o_ref[...] = out.astype(o_ref.dtype)             # (tb, action_num)


def policy_net_forward(x, params, *, block_batch: int = 1024,
                       compute_dtype=jnp.bfloat16):
    """Run the fused MLP kernel.

    x: (batch, env_dim) float32.
    params: (w1, b1, w2, b2, w3, b3) with torch-Linear-transposed weights,
            i.e. w has shape (in_features, out_features), b has shape (1, out).
    Returns (batch, action_num) float32.
    """
    # TODO(synk): for real DQN batches (32-512), fuse the target-net forward and
    # argmax/TD-target math into this pallas_call to amortize launch overhead.
    w1, b1, w2, b2, w3, b3 = params
    batch, env_dim = x.shape
    h1d = w1.shape[1]          # 128
    h2d = w2.shape[1]          # 64
    action_num = w3.shape[1]

    # Batch tile: multiple of 8 sublanes.  For large batches, make sure the grid
    # has >= 2 steps so both v7x TensorCores get work under "parallel" semantics.
    if batch > block_batch:
        tb = min(block_batch, _round_up(_cdiv(batch, 2), 8))
    else:
        tb = max(8, _round_up(batch, 8))
    pbatch = _round_up(batch, tb)

    xp = x.astype(jnp.float32)
    if pbatch != batch:
        # Only row padding (to a multiple of the sublane-aligned tile); padded
        # rows are sliced off below, so their contents never matter.
        xp = jnp.zeros((pbatch, env_dim), jnp.float32).at[:batch].set(xp)

    # Layer-1 params stay f32 (VPU path); layer-2/3 weights go bf16 for the MXU.
    w1f = w1.astype(jnp.float32)
    w2c = w2.astype(compute_dtype)
    w3c = w3.astype(compute_dtype)
    b1f = b1.reshape(1, h1d).astype(jnp.float32)
    b2f = b2.reshape(1, h2d).astype(jnp.float32)
    b3f = b3.reshape(1, action_num).astype(jnp.float32)

    grid = (pbatch // tb,)

    out = pl.pallas_call(
        policy_net_kernel,
        out_shape=jax.ShapeDtypeStruct((pbatch, action_num), jnp.float32),
        grid=grid,
        in_specs=[
            # x tile: pipelined over the batch grid, native env_dim width.
            pl.BlockSpec((tb, env_dim), lambda i: (i, 0)),
            # Weights / biases: constant index_map -> VMEM-resident, DMA'd once.
            pl.BlockSpec((env_dim, h1d), lambda i: (0, 0)),
            pl.BlockSpec((1, h1d), lambda i: (0, 0)),
            pl.BlockSpec((h1d, h2d), lambda i: (0, 0)),
            pl.BlockSpec((1, h2d), lambda i: (0, 0)),
            pl.BlockSpec((h2d, action_num), lambda i: (0, 0)),
            pl.BlockSpec((1, action_num), lambda i: (0, 0)),
        ],
        # Output at native action_num width (no lane padding, no wrapper slice copy).
        out_specs=pl.BlockSpec((tb, action_num), lambda i: (i, 0)),
        compiler_params=pltpu.CompilerParams(
            dimension_semantics=("parallel",),      # shards grid steps on v7x's 2 TCs
            vmem_limit_bytes=32 * 1024 * 1024,      # covers v5e's 16 MiB scoped default
        ),
    )(xp, w1f, b1f, w2c, b2f, w3c, b3f)

    return out if pbatch == batch else out[:batch]


def init_params(key, env_dim, action_num):
    """Deterministic parameter init (shapes match the PyTorch module)."""
    keys = jax.random.split(key, 6)

    def linear(kw, kb, fan_in, fan_out):
        # Same uniform(-1/sqrt(fan_in), 1/sqrt(fan_in)) scheme as torch.nn.Linear.
        bound = 1.0 / jnp.sqrt(jnp.float32(fan_in))
        w = jax.random.uniform(kw, (fan_in, fan_out), jnp.float32, -bound, bound)
        b = jax.random.uniform(kb, (1, fan_out), jnp.float32, -bound, bound)
        return w, b

    w1, b1 = linear(keys[0], keys[1], env_dim, 128)
    w2, b2 = linear(keys[2], keys[3], 128, 64)
    w3, b3 = linear(keys[4], keys[5], 64, action_num)
    return (w1, b1, w2, b2, w3, b3)


def reference_forward(x, params):
    """Pure-JAX f32 reference for correctness checking."""
    w1, b1, w2, b2, w3, b3 = params
    h1 = jnp.maximum(x @ w1 + b1, 0.0)
    h2 = jnp.maximum(h1 @ w2 + b2, 0.0)
    return h2 @ w3 + b3


if __name__ == "__main__":
    env_dim = 4      # e.g. CartPole observation dim
    action_num = 2   # e.g. CartPole action count

    key = jax.random.PRNGKey(0)
    k_params, k_x1, k_x2 = jax.random.split(key, 3)

    params = init_params(k_params, env_dim, action_num)

    # Small batch (single grid step, no padding).
    x_small = jax.random.normal(k_x1, (8, env_dim), dtype=jnp.float32)
    out_small = jax.block_until_ready(policy_net_forward(x_small, params))
    ref_small = reference_forward(x_small, params)
    assert out_small.shape == (8, action_num), out_small.shape
    assert jnp.allclose(out_small, ref_small, atol=2e-2, rtol=2e-2), \
        "small-batch mismatch vs reference"

    # Larger, non-multiple-of-8 batch: exercises row padding and a 2-step grid
    # (the path that feeds both v7x TensorCores).
    x_big = jax.random.normal(k_x2, (1539, env_dim), dtype=jnp.float32)
    out_big = jax.block_until_ready(policy_net_forward(x_big, params))
    ref_big = reference_forward(x_big, params)
    assert out_big.shape == (1539, action_num), out_big.shape
    assert jnp.allclose(out_big, ref_big, atol=2e-2, rtol=2e-2), \
        "large-batch mismatch vs reference"

    print("KERNEL_OK")
</pallas_src>

<mosaic_0001>
module attributes {stable_mosaic.version = 11 : i64} {
  func.func @policy_net_kernel(%arg0: i32, %arg1: memref<8x4xf32, #tpu.memory_space<vmem>>, %arg2: memref<4x128xf32, #tpu.memory_space<vmem>>, %arg3: memref<1x128xf32, #tpu.memory_space<vmem>>, %arg4: memref<128x64xbf16, #tpu.memory_space<vmem>>, %arg5: memref<1x64xf32, #tpu.memory_space<vmem>>, %arg6: memref<64x2xbf16, #tpu.memory_space<vmem>>, %arg7: memref<1x2xf32, #tpu.memory_space<vmem>>, %arg8: memref<8x2xf32, #tpu.memory_space<vmem>>) attributes {dimension_semantics = [#tpu.dimension_semantics<parallel>], iteration_bounds = array<i64: 1>, scalar_prefetch = 0 : i64, scratch_operands = 0 : i64, tpu.core_type = #tpu.core_type<tc>, window_params = [{transform_indices = @transform_0, window_bounds = array<i64: 8, 4>}, {pipeline_mode = #tpu.pipeline_mode<synchronous>, transform_indices = @transform_1, window_bounds = array<i64: 4, 128>}, {pipeline_mode = #tpu.pipeline_mode<synchronous>, transform_indices = @transform_2, window_bounds = array<i64: 1, 128>}, {pipeline_mode = #tpu.pipeline_mode<synchronous>, transform_indices = @transform_3, window_bounds = array<i64: 128, 64>}, {pipeline_mode = #tpu.pipeline_mode<synchronous>, transform_indices = @transform_4, window_bounds = array<i64: 1, 64>}, {pipeline_mode = #tpu.pipeline_mode<synchronous>, transform_indices = @transform_5, window_bounds = array<i64: 64, 2>}, {pipeline_mode = #tpu.pipeline_mode<synchronous>, transform_indices = @transform_6, window_bounds = array<i64: 1, 2>}, {transform_indices = @transform_7, window_bounds = array<i64: 8, 2>}]} {
    %c0 = arith.constant 0 : index
    %c0_0 = arith.constant 0 : index
    %0 = vector.load %arg1[%c0, %c0_0] : memref<8x4xf32, #tpu.memory_space<vmem>>, vector<8x4xf32>
    %c0_1 = arith.constant 0 : index
    %c0_2 = arith.constant 0 : index
    %1 = vector.load %arg3[%c0_1, %c0_2] : memref<1x128xf32, #tpu.memory_space<vmem>>, vector<1x128xf32>
    %2 = vector.extract_strided_slice %0 {offsets = [0, 0], sizes = [8, 1], strides = [1, 1]} : vector<8x4xf32> to vector<8x1xf32>
    %c0_3 = arith.constant 0 : index
    %c0_4 = arith.constant 0 : index
    %3 = vector.load %arg2[%c0_3, %c0_4] : memref<4x128xf32, #tpu.memory_space<vmem>>, vector<1x128xf32>
    %4 = vector.broadcast %2 : vector<8x1xf32> to vector<8x128xf32>
    %5 = vector.broadcast %3 : vector<1x128xf32> to vector<8x128xf32>
    %6 = arith.mulf %4, %5 : vector<8x128xf32>
    %7 = vector.broadcast %1 : vector<1x128xf32> to vector<8x128xf32>
    %8 = arith.addf %7, %6 : vector<8x128xf32>
    %9 = vector.extract_strided_slice %0 {offsets = [0, 1], sizes = [8, 1], strides = [1, 1]} : vector<8x4xf32> to vector<8x1xf32>
    %c1 = arith.constant 1 : index
    %c0_5 = arith.constant 0 : index
    %10 = vector.load %arg2[%c1, %c0_5] : memref<4x128xf32, #tpu.memory_space<vmem>>, vector<1x128xf32>
    %11 = vector.broadcast %9 : vector<8x1xf32> to vector<8x128xf32>
    %12 = vector.broadcast %10 : vector<1x128xf32> to vector<8x128xf32>
    %13 = arith.mulf %11, %12 : vector<8x128xf32>
    %14 = arith.addf %8, %13 : vector<8x128xf32>
    %15 = vector.extract_strided_slice %0 {offsets = [0, 2], sizes = [8, 1], strides = [1, 1]} : vector<8x4xf32> to vector<8x1xf32>
    %c2 = arith.constant 2 : index
    %c0_6 = arith.constant 0 : index
    %16 = vector.load %arg2[%c2, %c0_6] : memref<4x128xf32, #tpu.memory_space<vmem>>, vector<1x128xf32>
    %17 = vector.broadcast %15 : vector<8x1xf32> to vector<8x128xf32>
    %18 = vector.broadcast %16 : vector<1x128xf32> to vector<8x128xf32>
    %19 = arith.mulf %17, %18 : vector<8x128xf32>
    %20 = arith.addf %14, %19 : vector<8x128xf32>
    %21 = vector.extract_strided_slice %0 {offsets = [0, 3], sizes = [8, 1], strides = [1, 1]} : vector<8x4xf32> to vector<8x1xf32>
    %c3 = arith.constant 3 : index
    %c0_7 = arith.constant 0 : index
    %22 = vector.load %arg2[%c3, %c0_7] : memref<4x128xf32, #tpu.memory_space<vmem>>, vector<1x128xf32>
    %23 = vector.broadcast %21 : vector<8x1xf32> to vector<8x128xf32>
    %24 = vector.broadcast %22 : vector<1x128xf32> to vector<8x128xf32>
    %25 = arith.mulf %23, %24 : vector<8x128xf32>
    %26 = arith.addf %20, %25 : vector<8x128xf32>
    %cst = arith.constant 0.000000e+00 : f32
    %27 = vector.broadcast %cst : f32 to vector<8x128xf32>
    %28 = arith.maximumf %26, %27 : vector<8x128xf32>
    %29 = arith.truncf %28 : vector<8x128xf32> to vector<8x128xbf16>
    %c0_8 = arith.constant 0 : index
    %c0_9 = arith.constant 0 : index
    %30 = vector.load %arg4[%c0_8, %c0_9] : memref<128x64xbf16, #tpu.memory_space<vmem>>, vector<128x64xbf16>
    %cst_10 = arith.constant dense<0.000000e+00> : vector<8x64xf32>
    %31 = tpu.matmul %29, %30, %cst_10 {dimension_numbers = #tpu.dot_dimension_numbers<[1], [0], [0], [1], [0, 0, 1, 1], [], []>} : vector<8x128xbf16>, vector<128x64xbf16>, vector<8x64xf32> -> vector<8x64xf32>
    %c0_11 = arith.constant 0 : index
    %c0_12 = arith.constant 0 : index
    %32 = vector.load %arg5[%c0_11, %c0_12] : memref<1x64xf32, #tpu.memory_space<vmem>>, vector<1x64xf32>
    %33 = vector.broadcast %32 : vector<1x64xf32> to vector<8x64xf32>
    %34 = arith.addf %31, %33 : vector<8x64xf32>
    %cst_13 = arith.constant 0.000000e+00 : f32
    %35 = vector.broadcast %cst_13 : f32 to vector<8x64xf32>
    %36 = arith.maximumf %34, %35 : vector<8x64xf32>
    %37 = arith.truncf %36 : vector<8x64xf32> to vector<8x64xbf16>
    %c0_14 = arith.constant 0 : index
    %c0_15 = arith.constant 0 : index
    %38 = vector.load %arg6[%c0_14, %c0_15] : memref<64x2xbf16, #tpu.memory_space<vmem>>, vector<64x2xbf16>
    %cst_16 = arith.constant dense<0.000000e+00> : vector<8x2xf32>
    %39 = tpu.matmul %37, %38, %cst_16 {dimension_numbers = #tpu.dot_dimension_numbers<[1], [0], [0], [1], [0, 0, 1, 1], [], []>} : vector<8x64xbf16>, vector<64x2xbf16>, vector<8x2xf32> -> vector<8x2xf32>
    %c0_17 = arith.constant 0 : index
    %c0_18 = arith.constant 0 : index
    %40 = vector.load %arg7[%c0_17, %c0_18] : memref<1x2xf32, #tpu.memory_space<vmem>>, vector<1x2xf32>
    %41 = vector.broadcast %40 : vector<1x2xf32> to vector<8x2xf32>
    %42 = arith.addf %39, %41 : vector<8x2xf32>
    %c0_19 = arith.constant 0 : index
    %c0_20 = arith.constant 0 : index
    %43 = vector.load %arg8[%c0_19, %c0_20] : memref<8x2xf32, #tpu.memory_space<vmem>>, vector<8x2xf32>
    tpu.vector_store %arg8[%c0_19, %c0_20], %42 {strides = array<i32>} : memref<8x2xf32, #tpu.memory_space<vmem>>, vector<8x2xf32>,
    return
  }
  func.func @transform_0(%arg0: i32) -> (i32, i32) {
    %c0_i32 = arith.constant 0 : i32
    %c0_i32_0 = arith.constant 0 : i32
    return %arg0, %c0_i32 : i32, i32
  }
  func.func @transform_1(%arg0: i32) -> (i32, i32) {
    %c0_i32 = arith.constant 0 : i32
    %c0_i32_0 = arith.constant 0 : i32
    %c0_i32_1 = arith.constant 0 : i32
    return %c0_i32, %c0_i32_0 : i32, i32
  }
  func.func @transform_2(%arg0: i32) -> (i32, i32) {
    %c0_i32 = arith.constant 0 : i32
    %c0_i32_0 = arith.constant 0 : i32
    %c0_i32_1 = arith.constant 0 : i32
    return %c0_i32, %c0_i32_0 : i32, i32
  }
  func.func @transform_3(%arg0: i32) -> (i32, i32) {
    %c0_i32 = arith.constant 0 : i32
    %c0_i32_0 = arith.constant 0 : i32
    %c0_i32_1 = arith.constant 0 : i32
    return %c0_i32, %c0_i32_0 : i32, i32
  }
  func.func @transform_4(%arg0: i32) -> (i32, i32) {
    %c0_i32 = arith.constant 0 : i32
    %c0_i32_0 = arith.constant 0 : i32
    %c0_i32_1 = arith.constant 0 : i32
    return %c0_i32, %c0_i32_0 : i32, i32
  }
  func.func @transform_5(%arg0: i32) -> (i32, i32) {
    %c0_i32 = arith.constant 0 : i32
    %c0_i32_0 = arith.constant 0 : i32
    %c0_i32_1 = arith.constant 0 : i32
    return %c0_i32, %c0_i32_0 : i32, i32
  }
  func.func @transform_6(%arg0: i32) -> (i32, i32) {
    %c0_i32 = arith.constant 0 : i32
    %c0_i32_0 = arith.constant 0 : i32
    %c0_i32_1 = arith.constant 0 : i32
    return %c0_i32, %c0_i32_0 : i32, i32
  }
  func.func @transform_7(%arg0: i32) -> (i32, i32) {
    %c0_i32 = arith.constant 0 : i32
    %c0_i32_0 = arith.constant 0 : i32
    return %arg0, %c0_i32 : i32, i32
  }
}

</mosaic_0001>

<llo_original>
// kernel: tpu_custom_call.1
$region0: #{tpu_custom_call.1}
  #allocation0 [shape = 'u32[]', space=smem, size = 0x4, offset = 0x4, fixed_abs, tag = 'smem constant byte address 0x4 - core index']
  #allocation1 [shape = 'u32[144,128]{1,0:T(1,128)}', space=vmem, size = 0x12000, scoped, tag = 'internal scratch']
  %s0 = inlined_call_operand.vmem [shape: f32[8,4], index: 0, kind: input, shape index: {}]
  %s1 = inlined_call_operand.vmem [shape: f32[4,128], index: 1, kind: input, shape index: {}]
  %s2 = inlined_call_operand.vmem [shape: f32[1,128], index: 2, kind: input, shape index: {}]
  %s3 = inlined_call_operand.vmem [shape: bf16[128,64], index: 3, kind: input, shape index: {}]
  %s4 = inlined_call_operand.vmem [shape: f32[1,64], index: 4, kind: input, shape index: {}]
  %s5 = inlined_call_operand.vmem [shape: bf16[64,2], index: 5, kind: input, shape index: {}]
  %s6 = inlined_call_operand.vmem [shape: f32[1,2], index: 6, kind: input, shape index: {}]
  %s7 = inlined_call_operand.vmem [shape: f32[8,2], index: 7, kind: output, shape index: {}]
  %s8 = sld [smem:[#allocation0]]
  $region38: #{tpu_custom_call.1} parent=0
    _
  %s10 = ssub.s32 1, %s8
  %s11 = scalar_select 0, %s10, %s8
  // Predicated region
  $region2: #{tpu_custom_call.1} parent=0 // pred_check
    _
  $region3: #{tpu_custom_call.1} parent=0 // pred_check_branch
    %13 = sbr.rel (0) target = $region5
  $region4: #{tpu_custom_call.1} parent=0 // pred_region
    _
  $region5: #{tpu_custom_call.1} parent=0 // pred_fallthru
    _
  // Predicated region
  $region6: #{tpu_custom_call.1} parent=0 // pred_check
    _
  $region7: #{tpu_custom_call.1} parent=0 // pred_check_branch
    %15 = sbr.rel (0) target = $region9
  $region8: #{tpu_custom_call.1} parent=0 // pred_region
    _
  $region9: #{tpu_custom_call.1} parent=0 // pred_fallthru
    _
  // Predicated region
  $region10: #{tpu_custom_call.1} parent=0 // pred_check
    _
  $region11: #{tpu_custom_call.1} parent=0 // pred_check_branch
    %17 = sbr.rel (0) target = $region13
  $region12: #{tpu_custom_call.1} parent=0 // pred_region
    _
  $region13: #{tpu_custom_call.1} parent=0 // pred_fallthru
    _
  // Predicated region
  $region14: #{tpu_custom_call.1} parent=0 // pred_check
    _
  $region15: #{tpu_custom_call.1} parent=0 // pred_check_branch
    %19 = sbr.rel (0) target = $region17
  $region16: #{tpu_custom_call.1} parent=0 // pred_region
    _
  $region17: #{tpu_custom_call.1} parent=0 // pred_fallthru
    _
  // Predicated region
  $region18: #{tpu_custom_call.1} parent=0 // pred_check
    _
  $region19: #{tpu_custom_call.1} parent=0 // pred_check_branch
    %21 = sbr.rel (0) target = $region21
  $region20: #{tpu_custom_call.1} parent=0 // pred_region
    _
  $region21: #{tpu_custom_call.1} parent=0 // pred_fallthru
    _
  // Predicated region
  $region22: #{tpu_custom_call.1} parent=0 // pred_check
    _
  $region23: #{tpu_custom_call.1} parent=0 // pred_check_branch
    %23 = sbr.rel (0) target = $region25
  $region24: #{tpu_custom_call.1} parent=0 // pred_region
    _
  $region25: #{tpu_custom_call.1} parent=0 // pred_fallthru
    _
  // Predicated region
  $region26: #{tpu_custom_call.1} parent=0 // pred_check
    _
  $region27: #{tpu_custom_call.1} parent=0 // pred_check_branch
    %25 = sbr.rel (0) target = $region29
  $region28: #{tpu_custom_call.1} parent=0 // pred_region
    _
  $region29: #{tpu_custom_call.1} parent=0 // pred_fallthru
    _
  %v27 = vld [vmem:[%s0] sm:$0xff]
  %v28 = vld [vmem:[%s2] sm:$0x1]
  %v29 = vld [vmem:[%s1] sm:$0x1]
  %31 = vset.pattern.permute.xlu0 0
  %32 = vperm.xlu0 %31, %v27
  %v33 = vpop.permute.xlu0 %32
  %v35 = vlaneseq
  %v36 = vshrl.u32 %v35, 7
  %v37 = vsub.s32 0, %v36
  %v38 = vrot.slane %v29, %v37
  %v39 = vmul.f32 %v33, %v38
  %v41 = vlaneseq
  %v42 = vshrl.u32 %v41, 7
  %v43 = vsub.s32 0, %v42
  %v44 = vrot.slane %v28, %v43
  %v46 = vadd.f32 %v44, %v39
  %v47 = vld [vmem:[%s1 + $0x1] sm:$0x1]
  %48 = vset.pattern.permute.xlu0 1
  %49 = vperm.xlu0 %48, %v27
  %v50 = vpop.permute.xlu0 %49
  %v52 = vlaneseq
  %v53 = vshrl.u32 %v52, 7
  %v54 = vsub.s32 0, %v53
  %v55 = vrot.slane %v47, %v54
  %v56 = vmul.f32 %v50, %v55
  %v57 = vadd.f32 %v46, %v56
  %v58 = vld [vmem:[%s1 + $0x2] sm:$0x1]
  %59 = vset.pattern.permute.xlu0 2
  %60 = vperm.xlu0 %59, %v27
  %v61 = vpop.permute.xlu0 %60
  %v63 = vlaneseq
  %v64 = vshrl.u32 %v63, 7
  %v65 = vsub.s32 0, %v64
  %v66 = vrot.slane %v58, %v65
  %v67 = vmul.f32 %v61, %v66
  %v68 = vadd.f32 %v57, %v67
  %v69 = vld [vmem:[%s1 + $0x3] sm:$0x1]
  %70 = vset.pattern.permute.xlu0 3
  %71 = vperm.xlu0 %70, %v27
  %v72 = vpop.permute.xlu0 %71
  %v74 = vlaneseq
  %v75 = vshrl.u32 %v74, 7
  %v76 = vsub.s32 0, %v75
  %v77 = vrot.slane %v69, %v76
  %v78 = vmul.f32 %v72, %v77
  %v79 = vadd.f32 %v68, %v78
  %v80 = vmax.f32 %v79, 0.0
  %v81 = vpack.c.bf16 %v80, %v80
  %v82 = vld [vmem:[%s3] sm:$0xf]
  %v83 = vld [vmem:[%s3 + $0x4] sm:$0xf]
  %v84 = vld [vmem:[%s3 + $0x8] sm:$0xf]
  %v85 = vld [vmem:[%s3 + $0xc] sm:$0xf]
  %v86 = vld [vmem:[%s3 + $0x10] sm:$0xf]
  %v87 = vld [vmem:[%s3 + $0x14] sm:$0xf]
  %v88 = vld [vmem:[%s3 + $0x18] sm:$0xf]
  %v89 = vld [vmem:[%s3 + $0x1c] sm:$0xf]
  %v90 = vld [vmem:[%s3 + $0x20] sm:$0xf]
  %v91 = vld [vmem:[%s3 + $0x24] sm:$0xf]
  %v92 = vld [vmem:[%s3 + $0x28] sm:$0xf]
  %v93 = vld [vmem:[%s3 + $0x2c] sm:$0xf]
  %v94 = vld [vmem:[%s3 + $0x30] sm:$0xf]
  %v95 = vld [vmem:[%s3 + $0x34] sm:$0xf]
  %v96 = vld [vmem:[%s3 + $0x38] sm:$0xf]
  %v97 = vld [vmem:[%s3 + $0x3c] sm:$0xf]
  %v98 = vld [vmem:[%s4] sm:$0x1]
  %v100 = vlaneseq
  %v101 = vshrl.u32 %v100, 7
  %v102 = vsub.s32 0, %v101
  %v103 = vrot.slane %v98, %v102
  %v121 = vunpack.c.l.b16 %v82
  %v122 = vunpack.c.l.b16 %v83
  %v123 = vunpack.c.l.b16 %v84
  %v124 = vunpack.c.l.b16 %v85
  %v125 = vunpack.c.l.b16 %v86
  %v126 = vunpack.c.l.b16 %v87
  %v127 = vunpack.c.l.b16 %v88
  %v128 = vunpack.c.l.b16 %v89
  %v129 = vunpack.c.l.b16 %v90
  %v130 = vunpack.c.l.b16 %v91
  %v131 = vunpack.c.l.b16 %v92
  %v132 = vunpack.c.l.b16 %v93
  %v133 = vunpack.c.l.b16 %v94
  %v134 = vunpack.c.l.b16 %v95
  %v135 = vunpack.c.l.b16 %v96
  %v136 = vunpack.c.l.b16 %v97
  %v137 = vpack.c.b16 %v122, %v121
  %v138 = vpack.c.b16 %v124, %v123
  %v139 = vpack.c.b16 %v126, %v125
  %v140 = vpack.c.b16 %v128, %v127
  %v141 = vpack.c.b16 %v130, %v129
  %v142 = vpack.c.b16 %v132, %v131
  %v143 = vpack.c.b16 %v134, %v133
  %v144 = vpack.c.b16 %v136, %v135
  %153 = vmatprep.subr.bf16.mxu0 0
  %154 = vmatpush1.bf16.msra.mxu0 %v137
  %155 = vmatprep.subr.bf16.mxu0 0
  %156 = vmatpush1.bf16.msra.mxu0 %v138
  %157 = vmatprep.subr.bf16.mxu0 0
  %158 = vmatpush1.bf16.msra.mxu0 %v139
  %159 = vmatprep.subr.bf16.mxu0 0
  %160 = vmatpush1.bf16.msra.mxu0 %v140
  %161 = vmatprep.subr.bf16.mxu0 0
  %162 = vmatpush1.bf16.msra.mxu0 %v141
  %163 = vmatprep.subr.bf16.mxu0 0
  %164 = vmatpush1.bf16.msra.mxu0 %v142
  %165 = vmatprep.subr.bf16.mxu0 0
  %166 = vmatpush1.bf16.msra.mxu0 %v143
  %167 = vmatprep.subr.bf16.mxu0 0
  %168 = vmatpush1.bf16.msra.mxu0 %v144
  %169 = vmatprep.subr.bf16.mxu0 0
  %170 = vmatpush1.bf16.msra.mxu0 0
  %171 = vmatprep.subr.bf16.mxu0 0
  %172 = vmatpush1.bf16.msra.mxu0 0
  %173 = vmatprep.subr.bf16.mxu0 0
  %174 = vmatpush1.bf16.msra.mxu0 0
  %175 = vmatprep.subr.bf16.mxu0 0
  %176 = vmatpush1.bf16.msra.mxu0 0
  %177 = vmatprep.subr.bf16.mxu0 0
  %178 = vmatpush1.bf16.msra.mxu0 0
  %179 = vmatprep.subr.bf16.mxu0 0
  %180 = vmatpush1.bf16.msra.mxu0 0
  %181 = vmatprep.subr.bf16.mxu0 0
  %182 = vmatpush1.bf16.msra.mxu0 0
  %183 = vmatprep.subr.bf16.mxu0 0
  %184 = vmatpush1.bf16.msra.mxu0 0
  %185 = vmatprep.mubr.bf16.mxu0 0
  %186 = vmatmul.mubr.bf16.gmra.mrb[0].mxu0 %v81
  %v187 = vpop.f32.mrb[0].mxu0
  %v188 = vadd.f32 %v103, %v187
  %v189 = vpop.f32.mrb[0].mxu0
  %v190 = vpop.f32.mrb[0].mxu0
  %v191 = vpop.f32.mrb[0].mxu0
  %192 = vdwg.mxu0
  %v193 = vmax.f32 %v188, 0.0
  %v194 = vpack.c.bf16 %v193, %v193
  %v195 = vld [vmem:[%s5] sm:$0xf]
  %v196 = vld [vmem:[%s5 + $0x4] sm:$0xf]
  %v197 = vld [vmem:[%s5 + $0x8] sm:$0xf]
  %v198 = vld [vmem:[%s5 + $0xc] sm:$0xf]
  %v199 = vld [vmem:[%s5 + $0x10] sm:$0xf]
  %v200 = vld [vmem:[%s5 + $0x14] sm:$0xf]
  %v201 = vld [vmem:[%s5 + $0x18] sm:$0xf]
  %v202 = vld [vmem:[%s5 + $0x1c] sm:$0xf]
  %v203 = vld [vmem:[%s6] sm:$0x1]
  %v205 = vlaneseq
  %v206 = vshrl.u32 %v205, 7
  %v207 = vsub.s32 0, %v206
  %v208 = vrot.slane %v203, %v207
  %v218 = vunpack.c.l.b16 %v195
  %v219 = vunpack.c.l.b16 %v196
  %v220 = vunpack.c.l.b16 %v197
  %v221 = vunpack.c.l.b16 %v198
  %v222 = vunpack.c.l.b16 %v199
  %v223 = vunpack.c.l.b16 %v200
  %v224 = vunpack.c.l.b16 %v201
  %v225 = vunpack.c.l.b16 %v202
  %v226 = vpack.c.b16 %v219, %v218
  %v227 = vpack.c.b16 %v221, %v220
  %v228 = vpack.c.b16 %v223, %v222
  %v229 = vpack.c.b16 %v225, %v224
  %vm234 = vcmask 523264
  %v236 = vsel %vm234, %v194, 0
  %238 = vmatprep.subr.bf16.mxu0 0
  %239 = vmatpush1.bf16.msra.mxu0 %v226
  %240 = vmatprep.subr.bf16.mxu0 0
  %241 = vmatpush1.bf16.msra.mxu0 %v227
  %242 = vmatprep.subr.bf16.mxu0 0
  %243 = vmatpush1.bf16.msra.mxu0 %v228
  %244 = vmatprep.subr.bf16.mxu0 0
  %245 = vmatpush1.bf16.msra.mxu0 %v229
  %246 = vmatprep.subr.bf16.mxu0 0
  %247 = vmatpush1.bf16.msra.mxu0 0
  %248 = vmatprep.subr.bf16.mxu0 0
  %249 = vmatpush1.bf16.msra.mxu0 0
  %250 = vmatprep.subr.bf16.mxu0 0
  %251 = vmatpush1.bf16.msra.mxu0 0
  %252 = vmatprep.subr.bf16.mxu0 0
  %253 = vmatpush1.bf16.msra.mxu0 0
  %254 = vmatprep.subr.bf16.mxu0 0
  %255 = vmatpush1.bf16.msra.mxu0 0
  %256 = vmatprep.subr.bf16.mxu0 0
  %257 = vmatpush1.bf16.msra.mxu0 0
  %258 = vmatprep.subr.bf16.mxu0 0
  %259 = vmatpush1.bf16.msra.mxu0 0
  %260 = vmatprep.subr.bf16.mxu0 0
  %261 = vmatpush1.bf16.msra.mxu0 0
  %262 = vmatprep.subr.bf16.mxu0 0
  %263 = vmatpush1.bf16.msra.mxu0 0
  %264 = vmatprep.subr.bf16.mxu0 0
  %265 = vmatpush1.bf16.msra.mxu0 0
  %266 = vmatprep.subr.bf16.mxu0 0
  %267 = vmatpush1.bf16.msra.mxu0 0
  %268 = vmatprep.subr.bf16.mxu0 0
  %269 = vmatpush1.bf16.msra.mxu0 0
  %270 = vmatprep.mubr.bf16.mxu0 0
  %271 = vmatmul.mubr.bf16.gmra.mrb[0].mxu0 %v236
  %v272 = vpop.f32.mrb[0].mxu0
  %v273 = vadd.f32 %v208, %v272
  %v274 = vpop.f32.mrb[0].mxu0
  %v275 = vpop.f32.mrb[0].mxu0
  %v276 = vpop.f32.mrb[0].mxu0
  %277 = vdwg.mxu0
  %vm278 = vcmask 15360
  %279 = vst.msk [vmem:[%s7] sm:$0xff] %vm278, %v273
  // Predicated region
  $region30: #{tpu_custom_call.1} parent=0 // pred_check
    _
  $region31: #{tpu_custom_call.1} parent=0 // pred_check_branch
    %281 = sbr.rel (0) target = $region33
  $region32: #{tpu_custom_call.1} parent=0 // pred_region
    _
  $region33: #{tpu_custom_call.1} parent=0 // pred_fallthru
    _
  // Predicated region
  $region34: #{tpu_custom_call.1} parent=0 // pred_check
    _
  $region35: #{tpu_custom_call.1} parent=0 // pred_check_branch
    %283 = sbr.rel (0) target = $region37
  $region36: #{tpu_custom_call.1} parent=0 // pred_region
    _
  $region37: #{tpu_custom_call.1} parent=0 // pred_fallthru
    _

</llo_original>
